<compile_context>
chip_gen: v7x
topology: tpu7x:2x2x1
jax: 0.10.0
libtpu: 0.0.40
codegen_flags: <defaults>
</compile_context>

<pallas_src>
import functools

import jax
import jax.numpy as jnp
from jax.experimental import pallas as pl
from jax.experimental.pallas import tpu as pltpu


def _pool_kernel(x_ref, pw_ref, o_ref, *, width):
    # x_ref : (Rblk, 2*width)  row r=(n, ci, ho) holds [image row 2ho | image row 2ho+1]
    # pw_ref: (width, Wo)      horizontal pair-pooling matrix, 0.25 entries
    # o_ref : (Rblk, Wo)
    top = x_ref[:, :width]                 # image row 2*ho
    bot = x_ref[:, width:]                 # image row 2*ho + 1
    xh = top + bot                         # vertical 2-row sum (VPU)
    o_ref[...] = jnp.dot(xh, pw_ref[...],
                         preferred_element_type=jnp.float32).astype(o_ref.dtype)


def _conv_kernel(x_ref, w_ref, o_ref, *, block_n):
    # x_ref: (Bblk, Cin, S)   pooled activations, spatial flattened on the lane axis
    # w_ref: (Cout, Cin)      1x1 conv weight (bias=False)
    # o_ref: (Bblk, Cout, S)
    w = w_ref[...]
    for b in range(block_n):               # static, unrolled
        o_ref[b] = jnp.dot(w, x_ref[b],
                           preferred_element_type=jnp.float32).astype(o_ref.dtype)


def _pick_block(total, item_bytes, *, multiple=1, max_bytes=2 * 1024 * 1024,
                prefer_multi_step=False):
    """Largest divisor of `total` that is a multiple of `multiple` (or == total),
    keeps one block under `max_bytes`, and optionally leaves >= 2 grid steps
    (so both v7x TensorCores get work)."""
    cap = max(1, min(total, max_bytes // max(item_bytes, 1)))
    if prefer_multi_step and total >= 2:
        cap = min(cap, max(1, total // 2))
    best = None
    for r in range(1, cap + 1):
        if total % r == 0 and (r % multiple == 0 or r == total):
            best = r
    return best if best is not None else total


def transition_block(x_nchw, weight, temp=None, compute_dtype=None):
    """Forward pass of TransitionBlock: 1x1 conv (bias=False) then avg_pool2d(2),
    computed as pool-then-conv (mathematically identical, 4x less MXU work)."""
    # TODO(synk): conv_layer.Conv2dLayer's `temp` / `with_grad` semantics are not in
    # the reference source; implemented as a plain deterministic 1x1 conv, bias=False
    # (temp is accepted and ignored).
    N, Cin, H, W = x_nchw.shape
    Cout = weight.shape[0]
    Ho, Wo = H // 2, W // 2                     # avg_pool2d(2) floors odd spatial dims
    S = Ho * Wo
    out_dtype = x_nchw.dtype

    x = x_nchw[:, :, :2 * Ho, :2 * Wo]          # drop odd trailing row/col (no-op if even)
    w2 = weight[:, :, 0, 0]                     # (Cout, Cin)
    if compute_dtype is not None:
        x = x.astype(compute_dtype)
        w2 = w2.astype(compute_dtype)
    cdt = x.dtype
    esize = jnp.dtype(cdt).itemsize
    width = 2 * Wo                              # (cropped) image width

    # ---------------- kernel A: fused 2x2 / stride-2 average pool -----------------
    # Free reshape: row r = (n, ci, ho) = [image row 2ho | image row 2ho+1].
    x_rows = x.reshape(N * Cin * Ho, 2 * width)
    total_rows = N * Cin * Ho
    r_blk = _pick_block(total_rows, 2 * width * esize, multiple=8)

    # pw[w, wo] = 0.25 iff w // 2 == wo (vertical pair already summed -> 2x2 mean).
    pw = jnp.where(jnp.arange(width)[:, None] // 2 == jnp.arange(Wo)[None, :],
                   0.25, 0.0).astype(cdt)

    pooled = pl.pallas_call(
        functools.partial(_pool_kernel, width=width),
        out_shape=jax.ShapeDtypeStruct((total_rows, Wo), cdt),
        grid=(total_rows // r_blk,),
        in_specs=[
            pl.BlockSpec((r_blk, 2 * width), lambda r: (r, 0)),
            pl.BlockSpec((width, Wo), lambda r: (0, 0)),
        ],
        out_specs=pl.BlockSpec((r_blk, Wo), lambda r: (r, 0)),
        compiler_params=pltpu.CompilerParams(
            dimension_semantics=("parallel",),
            vmem_limit_bytes=32 * 1024 * 1024),
    )(x_rows, pw)

    # ---------------- kernel B: 1x1 conv as (Cout, Cin) @ (Cin, Ho*Wo) ------------
    pooled = pooled.reshape(N, Cin, S)          # free reshape (row-major contiguity)
    b_blk = _pick_block(N, Cin * S * esize, multiple=1, prefer_multi_step=True)

    out = pl.pallas_call(
        functools.partial(_conv_kernel, block_n=b_blk),
        out_shape=jax.ShapeDtypeStruct((N, Cout, S), out_dtype),
        grid=(N // b_blk,),
        in_specs=[
            pl.BlockSpec((b_blk, Cin, S), lambda n: (n, 0, 0)),
            pl.BlockSpec((Cout, Cin), lambda n: (0, 0)),
        ],
        out_specs=pl.BlockSpec((b_blk, Cout, S), lambda n: (n, 0, 0)),
        compiler_params=pltpu.CompilerParams(
            dimension_semantics=("parallel",),
            vmem_limit_bytes=32 * 1024 * 1024),
    )(pooled, w2)

    return out.reshape(N, Cout, Ho, Wo)         # free reshape; already NCHW


def reference(x_nchw, weight):
    """Plain-JAX reference: 1x1 conv (no bias) followed by 2x2/stride-2 avg pool."""
    y = jnp.einsum('nchw,oc->nohw', x_nchw, weight[:, :, 0, 0])
    N, Co, H, W = y.shape
    return y.reshape(N, Co, H // 2, 2, W // 2, 2).mean(axis=(3, 5))


if __name__ == "__main__":
    key = jax.random.PRNGKey(0)
    kx, kw = jax.random.split(key)

    N, Cin, Cout, H, W = 2, 8, 4, 16, 16
    x = jax.random.normal(kx, (N, Cin, H, W), jnp.float32)
    # deterministic init of the 1x1 conv weight, PyTorch shape (Cout, Cin, 1, 1)
    weight = jax.random.normal(kw, (Cout, Cin, 1, 1), jnp.float32) * (2.0 / Cin) ** 0.5

    ref = reference(x, weight)

    # f32 path: exact (up to summation order) match with the reference.
    out = jax.block_until_ready(transition_block(x, weight, temp=1.0))
    assert out.shape == (N, Cout, H // 2, W // 2), out.shape
    assert jnp.allclose(out, ref, atol=1e-5, rtol=1e-5), "f32 mismatch vs reference"

    # bf16 compute path (halved HBM traffic, f32 MXU accumulation, f32 output).
    out_bf16 = jax.block_until_ready(
        transition_block(x, weight, temp=1.0, compute_dtype=jnp.bfloat16))
    assert out_bf16.dtype == x.dtype
    assert jnp.allclose(out_bf16, ref, atol=0.08, rtol=0.08), "bf16 mismatch vs reference"

    print("KERNEL_OK")
</pallas_src>

<mosaic_0001>
module attributes {stable_mosaic.version = 11 : i64} {
  func.func @_pool_kernel(%arg0: i32, %arg1: memref<128x32xf32, #tpu.memory_space<vmem>>, %arg2: memref<16x8xf32, #tpu.memory_space<vmem>>, %arg3: memref<128x8xf32, #tpu.memory_space<vmem>>) attributes {dimension_semantics = [#tpu.dimension_semantics<parallel>], iteration_bounds = array<i64: 1>, scalar_prefetch = 0 : i64, scratch_operands = 0 : i64, tpu.core_type = #tpu.core_type<tc>, window_params = [{transform_indices = @transform_0, window_bounds = array<i64: 128, 32>}, {pipeline_mode = #tpu.pipeline_mode<synchronous>, transform_indices = @transform_1, window_bounds = array<i64: 16, 8>}, {transform_indices = @transform_2, window_bounds = array<i64: 128, 8>}]} {
    %c0 = arith.constant 0 : index
    %c0_0 = arith.constant 0 : index
    %0 = vector.load %arg1[%c0, %c0_0] : memref<128x32xf32, #tpu.memory_space<vmem>>, vector<128x16xf32>
    %c0_1 = arith.constant 0 : index
    %c16 = arith.constant 16 : index
    %1 = vector.load %arg1[%c0_1, %c16] : memref<128x32xf32, #tpu.memory_space<vmem>>, vector<128x16xf32>
    %2 = arith.addf %0, %1 : vector<128x16xf32>
    %c0_2 = arith.constant 0 : index
    %c0_3 = arith.constant 0 : index
    %3 = vector.load %arg2[%c0_2, %c0_3] : memref<16x8xf32, #tpu.memory_space<vmem>>, vector<16x8xf32>
    %cst = arith.constant dense<0.000000e+00> : vector<128x8xf32>
    %4 = tpu.matmul %2, %3, %cst {dimension_numbers = #tpu.dot_dimension_numbers<[1], [0], [0], [1], [0, 0, 1, 1], [], []>} : vector<128x16xf32>, vector<16x8xf32>, vector<128x8xf32> -> vector<128x8xf32>
    %c0_4 = arith.constant 0 : index
    %c0_5 = arith.constant 0 : index
    %5 = vector.load %arg3[%c0_4, %c0_5] : memref<128x8xf32, #tpu.memory_space<vmem>>, vector<128x8xf32>
    tpu.vector_store %arg3[%c0_4, %c0_5], %4 {strides = array<i32>} : memref<128x8xf32, #tpu.memory_space<vmem>>, vector<128x8xf32>,
    return
  }
  func.func @transform_0(%arg0: i32) -> (i32, i32) {
    %c0_i32 = arith.constant 0 : i32
    %c0_i32_0 = arith.constant 0 : i32
    return %arg0, %c0_i32 : i32, i32
  }
  func.func @transform_1(%arg0: i32) -> (i32, i32) {
    %c0_i32 = arith.constant 0 : i32
    %c0_i32_0 = arith.constant 0 : i32
    %c0_i32_1 = arith.constant 0 : i32
    return %c0_i32, %c0_i32_0 : i32, i32
  }
  func.func @transform_2(%arg0: i32) -> (i32, i32) {
    %c0_i32 = arith.constant 0 : i32
    %c0_i32_0 = arith.constant 0 : i32
    return %arg0, %c0_i32 : i32, i32
  }
}

</mosaic_0001>

<llo_original>
// kernel: tpu_custom_call.1
$region0: #{tpu_custom_call.1}
  #allocation0 [shape = 'u32[]', space=smem, size = 0x4, offset = 0x4, fixed_abs, tag = 'smem constant byte address 0x4 - core index']
  #allocation1 [shape = 'u32[144,128]{1,0:T(1,128)}', space=vmem, size = 0x12000, scoped, tag = 'internal scratch']
  %s0 = inlined_call_operand.vmem [shape: f32[128,32], index: 0, kind: input, shape index: {}]
  %s1 = inlined_call_operand.vmem [shape: f32[16,8], index: 1, kind: input, shape index: {}]
  %s2 = inlined_call_operand.vmem [shape: f32[128,8], index: 2, kind: output, shape index: {}]
  %s3 = sld [smem:[#allocation0]]
  $region18: #{tpu_custom_call.1} parent=0
    _
  %s5 = ssub.s32 1, %s3
  %s6 = scalar_select 0, %s5, %s3
  // Predicated region
  $region2: #{tpu_custom_call.1} parent=0 // pred_check
    _
  $region3: #{tpu_custom_call.1} parent=0 // pred_check_branch
    %8 = sbr.rel (0) target = $region5
  $region4: #{tpu_custom_call.1} parent=0 // pred_region
    _
  $region5: #{tpu_custom_call.1} parent=0 // pred_fallthru
    _
  // Predicated region
  $region6: #{tpu_custom_call.1} parent=0 // pred_check
    _
  $region7: #{tpu_custom_call.1} parent=0 // pred_check_branch
    %10 = sbr.rel (0) target = $region9
  $region8: #{tpu_custom_call.1} parent=0 // pred_region
    _
  $region9: #{tpu_custom_call.1} parent=0 // pred_fallthru
    _
  %v11 = vld [vmem:[%s0] sm:$0xff]
  %v12 = vld [vmem:[%s0 + $0x8] sm:$0xff]
  %v13 = vld [vmem:[%s0 + $0x10] sm:$0xff]
  %v14 = vld [vmem:[%s0 + $0x18] sm:$0xff]
  %v15 = vld [vmem:[%s0 + $0x20] sm:$0xff]
  %v16 = vld [vmem:[%s0 + $0x28] sm:$0xff]
  %v17 = vld [vmem:[%s0 + $0x30] sm:$0xff]
  %v18 = vld [vmem:[%s0 + $0x38] sm:$0xff]
  %v19 = vld [vmem:[%s0 + $0x40] sm:$0xff]
  %v20 = vld [vmem:[%s0 + $0x48] sm:$0xff]
  %v21 = vld [vmem:[%s0 + $0x50] sm:$0xff]
  %v22 = vld [vmem:[%s0 + $0x58] sm:$0xff]
  %v23 = vld [vmem:[%s0 + $0x60] sm:$0xff]
  %v24 = vld [vmem:[%s0 + $0x68] sm:$0xff]
  %v25 = vld [vmem:[%s0 + $0x70] sm:$0xff]
  %v26 = vld [vmem:[%s0 + $0x78] sm:$0xff]
  %43 = vrot.lane.b32.xlu0 %v11, 112
  %v44 = vpop.permute.xlu0 %43
  %45 = vrot.lane.b32.xlu0 %v12, 112
  %v46 = vpop.permute.xlu0 %45
  %47 = vrot.lane.b32.xlu0 %v13, 112
  %v48 = vpop.permute.xlu0 %47
  %49 = vrot.lane.b32.xlu0 %v14, 112
  %v50 = vpop.permute.xlu0 %49
  %51 = vrot.lane.b32.xlu0 %v15, 112
  %v52 = vpop.permute.xlu0 %51
  %53 = vrot.lane.b32.xlu0 %v16, 112
  %v54 = vpop.permute.xlu0 %53
  %55 = vrot.lane.b32.xlu0 %v17, 112
  %v56 = vpop.permute.xlu0 %55
  %57 = vrot.lane.b32.xlu0 %v18, 112
  %v58 = vpop.permute.xlu0 %57
  %59 = vrot.lane.b32.xlu0 %v19, 112
  %v60 = vpop.permute.xlu0 %59
  %61 = vrot.lane.b32.xlu0 %v20, 112
  %v62 = vpop.permute.xlu0 %61
  %63 = vrot.lane.b32.xlu0 %v21, 112
  %v64 = vpop.permute.xlu0 %63
  %65 = vrot.lane.b32.xlu0 %v22, 112
  %v66 = vpop.permute.xlu0 %65
  %67 = vrot.lane.b32.xlu0 %v23, 112
  %v68 = vpop.permute.xlu0 %67
  %69 = vrot.lane.b32.xlu0 %v24, 112
  %v70 = vpop.permute.xlu0 %69
  %71 = vrot.lane.b32.xlu0 %v25, 112
  %v72 = vpop.permute.xlu0 %71
  %73 = vrot.lane.b32.xlu0 %v26, 112
  %v74 = vpop.permute.xlu0 %73
  %v91 = vadd.f32 %v11, %v44
  %v92 = vadd.f32 %v12, %v46
  %v93 = vadd.f32 %v13, %v48
  %v94 = vadd.f32 %v14, %v50
  %v95 = vadd.f32 %v15, %v52
  %v96 = vadd.f32 %v16, %v54
  %v97 = vadd.f32 %v17, %v56
  %v98 = vadd.f32 %v18, %v58
  %v99 = vadd.f32 %v19, %v60
  %v100 = vadd.f32 %v20, %v62
  %v101 = vadd.f32 %v21, %v64
  %v102 = vadd.f32 %v22, %v66
  %v103 = vadd.f32 %v23, %v68
  %v104 = vadd.f32 %v24, %v70
  %v105 = vadd.f32 %v25, %v72
  %v106 = vadd.f32 %v26, %v74
  %v107 = vld [vmem:[%s1] sm:$0xff]
  %v108 = vld [vmem:[%s1 + $0x8] sm:$0xff]
  %vm109 = vcmask 130048
  %v111 = vsel %vm109, %v91, 0
  %v114 = vsel %vm109, %v92, 0
  %v117 = vsel %vm109, %v93, 0
  %v120 = vsel %vm109, %v94, 0
  %v123 = vsel %vm109, %v95, 0
  %v126 = vsel %vm109, %v96, 0
  %v129 = vsel %vm109, %v97, 0
  %v132 = vsel %vm109, %v98, 0
  %v135 = vsel %vm109, %v99, 0
  %v138 = vsel %vm109, %v100, 0
  %v141 = vsel %vm109, %v101, 0
  %v144 = vsel %vm109, %v102, 0
  %v147 = vsel %vm109, %v103, 0
  %v150 = vsel %vm109, %v104, 0
  %v153 = vsel %vm109, %v105, 0
  %v156 = vsel %vm109, %v106, 0
  %158 = vmatprep.subr.mxu0 0.0
  %159 = vmatpush1.msra.mxu0 %v107
  %160 = vmatprep.subr.mxu0 0.0
  %161 = vmatpush1.msra.mxu0 %v108
  %162 = vmatprep.subr.mxu0 0.0
  %163 = vmatpush1.msra.mxu0 0.0
  %164 = vmatprep.subr.mxu0 0.0
  %165 = vmatpush1.msra.mxu0 0.0
  %166 = vmatprep.subr.mxu0 0.0
  %167 = vmatpush1.msra.mxu0 0.0
  %168 = vmatprep.subr.mxu0 0.0
  %169 = vmatpush1.msra.mxu0 0.0
  %170 = vmatprep.subr.mxu0 0.0
  %171 = vmatpush1.msra.mxu0 0.0
  %172 = vmatprep.subr.mxu0 0.0
  %173 = vmatpush1.msra.mxu0 0.0
  %174 = vmatprep.subr.mxu0 0.0
  %175 = vmatpush1.msra.mxu0 0.0
  %176 = vmatprep.subr.mxu0 0.0
  %177 = vmatpush1.msra.mxu0 0.0
  %178 = vmatprep.subr.mxu0 0.0
  %179 = vmatpush1.msra.mxu0 0.0
  %180 = vmatprep.subr.mxu0 0.0
  %181 = vmatpush1.msra.mxu0 0.0
  %182 = vmatprep.subr.mxu0 0.0
  %183 = vmatpush1.msra.mxu0 0.0
  %184 = vmatprep.subr.mxu0 0.0
  %185 = vmatpush1.msra.mxu0 0.0
  %186 = vmatprep.subr.mxu0 0.0
  %187 = vmatpush1.msra.mxu0 0.0
  %188 = vmatprep.subr.mxu0 0.0
  %189 = vmatpush1.msra.mxu0 0.0
  %190 = vmatprep.subr.mxu0 0.0
  %191 = vmatpush1.msra.mxu0 0.0
  %192 = vmatprep.subr.mxu0 0.0
  %193 = vmatpush1.msra.mxu0 0.0
  %194 = vmatprep.subr.mxu0 0.0
  %195 = vmatpush1.msra.mxu0 0.0
  %196 = vmatprep.subr.mxu0 0.0
  %197 = vmatpush1.msra.mxu0 0.0
  %198 = vmatprep.subr.mxu0 0.0
  %199 = vmatpush1.msra.mxu0 0.0
  %200 = vmatprep.subr.mxu0 0.0
  %201 = vmatpush1.msra.mxu0 0.0
  %202 = vmatprep.subr.mxu0 0.0
  %203 = vmatpush1.msra.mxu0 0.0
  %204 = vmatprep.subr.mxu0 0.0
  %205 = vmatpush1.msra.mxu0 0.0
  %206 = vmatprep.subr.mxu0 0.0
  %207 = vmatpush1.msra.mxu0 0.0
  %208 = vmatprep.subr.mxu0 0.0
  %209 = vmatpush1.msra.mxu0 0.0
  %210 = vmatprep.subr.mxu0 0.0
  %211 = vmatpush1.msra.mxu0 0.0
  %212 = vmatprep.subr.mxu0 0.0
  %213 = vmatpush1.msra.mxu0 0.0
  %214 = vmatprep.subr.mxu0 0.0
  %215 = vmatpush1.msra.mxu0 0.0
  %216 = vmatprep.subr.mxu0 0.0
  %217 = vmatpush1.msra.mxu0 0.0
  %218 = vmatprep.subr.mxu0 0.0
  %219 = vmatpush1.msra.mxu0 0.0
  %220 = vmatprep.subr.mxu0 0.0
  %221 = vmatpush1.msra.mxu0 0.0
  %222 = vmatprep.mubr.f32.mxu0 0.0
  %223 = vmatmul.mubr.f32.gmra.mrb[0].mxu0 %v111
  %v224 = vpop.f32.mrb[0].mxu0
  %v225 = vadd.f32 0.0, %v224
  %v226 = vpop.f32.mrb[0].mxu0
  %227 = vmatprep.mubr.f32.mxu0 0.0
  %228 = vmatmul.mubr.f32.gmra.mrb[0].mxu0 %v114
  %v229 = vpop.f32.mrb[0].mxu0
  %v230 = vadd.f32 0.0, %v229
  %v231 = vpop.f32.mrb[0].mxu0
  %232 = vmatprep.mubr.f32.mxu0 0.0
  %233 = vmatmul.mubr.f32.gmra.mrb[0].mxu0 %v117
  %v234 = vpop.f32.mrb[0].mxu0
  %v235 = vadd.f32 0.0, %v234
  %v236 = vpop.f32.mrb[0].mxu0
  %237 = vmatprep.mubr.f32.mxu0 0.0
  %238 = vmatmul.mubr.f32.gmra.mrb[0].mxu0 %v120
  %v239 = vpop.f32.mrb[0].mxu0
  %v240 = vadd.f32 0.0, %v239
  %v241 = vpop.f32.mrb[0].mxu0
  %242 = vmatprep.mubr.f32.mxu0 0.0
  %243 = vmatmul.mubr.f32.gmra.mrb[0].mxu0 %v123
  %v244 = vpop.f32.mrb[0].mxu0
  %v245 = vadd.f32 0.0, %v244
  %v246 = vpop.f32.mrb[0].mxu0
  %247 = vmatprep.mubr.f32.mxu0 0.0
  %248 = vmatmul.mubr.f32.gmra.mrb[0].mxu0 %v126
  %v249 = vpop.f32.mrb[0].mxu0
  %v250 = vadd.f32 0.0, %v249
  %v251 = vpop.f32.mrb[0].mxu0
  %252 = vmatprep.mubr.f32.mxu0 0.0
  %253 = vmatmul.mubr.f32.gmra.mrb[0].mxu0 %v129
  %v254 = vpop.f32.mrb[0].mxu0
  %v255 = vadd.f32 0.0, %v254
  %v256 = vpop.f32.mrb[0].mxu0
  %257 = vmatprep.mubr.f32.mxu0 0.0
  %258 = vmatmul.mubr.f32.gmra.mrb[0].mxu0 %v132
  %v259 = vpop.f32.mrb[0].mxu0
  %v260 = vadd.f32 0.0, %v259
  %v261 = vpop.f32.mrb[0].mxu0
  %262 = vmatprep.mubr.f32.mxu0 0.0
  %263 = vmatmul.mubr.f32.gmra.mrb[0].mxu0 %v135
  %v264 = vpop.f32.mrb[0].mxu0
  %v265 = vadd.f32 0.0, %v264
  %v266 = vpop.f32.mrb[0].mxu0
  %267 = vmatprep.mubr.f32.mxu0 0.0
  %268 = vmatmul.mubr.f32.gmra.mrb[0].mxu0 %v138
  %v269 = vpop.f32.mrb[0].mxu0
  %v270 = vadd.f32 0.0, %v269
  %v271 = vpop.f32.mrb[0].mxu0
  %272 = vmatprep.mubr.f32.mxu0 0.0
  %273 = vmatmul.mubr.f32.gmra.mrb[0].mxu0 %v141
  %v274 = vpop.f32.mrb[0].mxu0
  %v275 = vadd.f32 0.0, %v274
  %v276 = vpop.f32.mrb[0].mxu0
  %277 = vmatprep.mubr.f32.mxu0 0.0
  %278 = vmatmul.mubr.f32.gmra.mrb[0].mxu0 %v144
  %v279 = vpop.f32.mrb[0].mxu0
  %v280 = vadd.f32 0.0, %v279
  %v281 = vpop.f32.mrb[0].mxu0
  %282 = vmatprep.mubr.f32.mxu0 0.0
  %283 = vmatmul.mubr.f32.gmra.mrb[0].mxu0 %v147
  %v284 = vpop.f32.mrb[0].mxu0
  %v285 = vadd.f32 0.0, %v284
  %v286 = vpop.f32.mrb[0].mxu0
  %287 = vmatprep.mubr.f32.mxu0 0.0
  %288 = vmatmul.mubr.f32.gmra.mrb[0].mxu0 %v150
  %v289 = vpop.f32.mrb[0].mxu0
  %v290 = vadd.f32 0.0, %v289
  %v291 = vpop.f32.mrb[0].mxu0
  %292 = vmatprep.mubr.f32.mxu0 0.0
  %293 = vmatmul.mubr.f32.gmra.mrb[0].mxu0 %v153
  %v294 = vpop.f32.mrb[0].mxu0
  %v295 = vadd.f32 0.0, %v294
  %v296 = vpop.f32.mrb[0].mxu0
  %297 = vmatprep.mubr.f32.mxu0 0.0
  %298 = vmatmul.mubr.f32.gmra.mrb[0].mxu0 %v156
  %v299 = vpop.f32.mrb[0].mxu0
  %v300 = vadd.f32 0.0, %v299
  %v301 = vpop.f32.mrb[0].mxu0
  %302 = vdwg.mxu0
  %vm303 = vcmask 64512
  %304 = vst.msk [vmem:[%s2] sm:$0xff] %vm303, %v225
  %305 = vst.msk [vmem:[%s2 + $0x8] sm:$0xff] %vm303, %v230
  %306 = vst.msk [vmem:[%s2 + $0x10] sm:$0xff] %vm303, %v235
  %307 = vst.msk [vmem:[%s2 + $0x18] sm:$0xff] %vm303, %v240
  %308 = vst.msk [vmem:[%s2 + $0x20] sm:$0xff] %vm303, %v245
  %309 = vst.msk [vmem:[%s2 + $0x28] sm:$0xff] %vm303, %v250
  %310 = vst.msk [vmem:[%s2 + $0x30] sm:$0xff] %vm303, %v255
  %311 = vst.msk [vmem:[%s2 + $0x38] sm:$0xff] %vm303, %v260
  %312 = vst.msk [vmem:[%s2 + $0x40] sm:$0xff] %vm303, %v265
  %313 = vst.msk [vmem:[%s2 + $0x48] sm:$0xff] %vm303, %v270
  %314 = vst.msk [vmem:[%s2 + $0x50] sm:$0xff] %vm303, %v275
  %315 = vst.msk [vmem:[%s2 + $0x58] sm:$0xff] %vm303, %v280
  %316 = vst.msk [vmem:[%s2 + $0x60] sm:$0xff] %vm303, %v285
  %317 = vst.msk [vmem:[%s2 + $0x68] sm:$0xff] %vm303, %v290
  %318 = vst.msk [vmem:[%s2 + $0x70] sm:$0xff] %vm303, %v295
  %319 = vst.msk [vmem:[%s2 + $0x78] sm:$0xff] %vm303, %v300
  // Predicated region
  $region10: #{tpu_custom_call.1} parent=0 // pred_check
    _
  $region11: #{tpu_custom_call.1} parent=0 // pred_check_branch
    %321 = sbr.rel (0) target = $region13
  $region12: #{tpu_custom_call.1} parent=0 // pred_region
    _
  $region13: #{tpu_custom_call.1} parent=0 // pred_fallthru
    _
  // Predicated region
  $region14: #{tpu_custom_call.1} parent=0 // pred_check
    _
  $region15: #{tpu_custom_call.1} parent=0 // pred_check_branch
    %323 = sbr.rel (0) target = $region17
  $region16: #{tpu_custom_call.1} parent=0 // pred_region
    _
  $region17: #{tpu_custom_call.1} parent=0 // pred_fallthru
    _

</llo_original>
